<compile_context>
chip_gen: v5e
topology: v5e:2x2
jax: 0.10.0
libtpu: 0.0.40
codegen_flags: <defaults>
</compile_context>

<pallas_src>
import functools
import math
import numpy as np

import jax
import jax.numpy as jnp
from jax.experimental import pallas as pl
from jax.experimental.pallas import tpu as pltpu


# Scoped VMEM cap: above the v5e (16 MiB) / v6e (32 MiB) defaults, below v7x's 64 MiB
# physical VMEM.
_VMEM_LIMIT = 48 * 1024 * 1024


def _tile(dim, pref, align):
    """Largest divisor of `dim` that is <= `pref` and a multiple of `align`.
    Falls back to the full dimension (always a legal block) if no aligned divisor."""
    if dim <= pref:
        return dim
    cand = (pref // align) * align
    while cand >= align:
        if dim % cand == 0:
            return cand
        cand -= align
    return dim


def _round_up(x, m):
    return ((x + m - 1) // m) * m


# ----------------------------------------------------------------------------
# Tiled matmul + bias (+ optional ReLU): grid (M/tm, N/tn, K/tk), f32 accumulator
# ----------------------------------------------------------------------------

def _matmul_bias_kernel(x_ref, w_ref, b_ref, o_ref, acc_ref, *, activation):
    @pl.when(pl.program_id(2) == 0)
    def _():
        acc_ref[...] = jnp.zeros_like(acc_ref)

    acc_ref[...] += jnp.dot(x_ref[...].astype(jnp.bfloat16),
                            w_ref[...].astype(jnp.bfloat16),
                            preferred_element_type=jnp.float32)

    @pl.when(pl.program_id(2) == pl.num_programs(2) - 1)
    def _():
        acc = acc_ref[...] + b_ref[...]
        if activation == "relu":
            acc = jnp.maximum(acc, 0.0)
        o_ref[...] = acc.astype(o_ref.dtype)


def matmul_bias(x, w, b, activation=None, out_dtype=None):
    """y = act(x @ w + b); x: (..., K) bf16/f32, w: (K, N) bf16, b: (N,) f32."""
    K, N = w.shape
    orig = x.shape
    x2 = x.reshape(-1, K)
    M = x2.shape[0]
    out_dtype = out_dtype or x.dtype
    tm = _tile(M, 256, 8)
    tn = _tile(N, 512, 128)
    tk = _tile(K, 512, 128)
    out = pl.pallas_call(
        functools.partial(_matmul_bias_kernel, activation=activation),
        out_shape=jax.ShapeDtypeStruct((M, N), out_dtype),
        grid=(M // tm, N // tn, K // tk),
        in_specs=[
            pl.BlockSpec((tm, tk), lambda i, j, k: (i, k)),
            pl.BlockSpec((tk, tn), lambda i, j, k: (k, j)),
            pl.BlockSpec((1, tn), lambda i, j, k: (0, j)),
        ],
        out_specs=pl.BlockSpec((tm, tn), lambda i, j, k: (i, j)),
        scratch_shapes=[pltpu.VMEM((tm, tn), jnp.float32)],
        compiler_params=pltpu.CompilerParams(
            dimension_semantics=("parallel", "parallel", "arbitrary"),
            vmem_limit_bytes=_VMEM_LIMIT),
    )(x2, w, b.reshape(1, N))
    return out.reshape(orig[:-1] + (N,))


# ----------------------------------------------------------------------------
# Fused output-projection + residual + LayerNorm (post-norm residual block tail)
# ----------------------------------------------------------------------------

def _proj_add_ln_kernel(x_ref, w_ref, b_ref, res_ref, g_ref, be_ref, o_ref, *, eps):
    acc = jnp.dot(x_ref[...].astype(jnp.bfloat16), w_ref[...].astype(jnp.bfloat16),
                  preferred_element_type=jnp.float32)
    z = acc + b_ref[...] + res_ref[...].astype(jnp.float32)
    mean = jnp.mean(z, axis=-1, keepdims=True)
    var = jnp.mean((z - mean) ** 2, axis=-1, keepdims=True)
    zn = (z - mean) * jax.lax.rsqrt(var + eps)
    o_ref[...] = (zn * g_ref[...] + be_ref[...]).astype(o_ref.dtype)


def proj_add_layernorm(x, w, b, res, gamma, beta, eps=1e-5):
    """LayerNorm(res + x @ w + b) in one kernel (no HBM round trip for add/LN)."""
    K, N = w.shape
    orig = res.shape
    x2 = x.reshape(-1, K)
    r2 = res.reshape(-1, N)
    M = x2.shape[0]
    tm = _tile(M, 256, 8)
    # TODO(synk): on v7x mark the index-invariant weight block with pipeline_mode=pl.Buffered(1).
    out = pl.pallas_call(
        functools.partial(_proj_add_ln_kernel, eps=eps),
        out_shape=jax.ShapeDtypeStruct((M, N), res.dtype),
        grid=(M // tm,),
        in_specs=[
            pl.BlockSpec((tm, K), lambda i: (i, 0)),
            pl.BlockSpec((K, N), lambda i: (0, 0)),
            pl.BlockSpec((1, N), lambda i: (0, 0)),
            pl.BlockSpec((tm, N), lambda i: (i, 0)),
            pl.BlockSpec((1, N), lambda i: (0, 0)),
            pl.BlockSpec((1, N), lambda i: (0, 0)),
        ],
        out_specs=pl.BlockSpec((tm, N), lambda i: (i, 0)),
        compiler_params=pltpu.CompilerParams(
            dimension_semantics=("parallel",), vmem_limit_bytes=_VMEM_LIMIT),
    )(x2, w, b.reshape(1, N), r2, gamma.reshape(1, N), beta.reshape(1, N))
    return out.reshape(orig)


# ----------------------------------------------------------------------------
# Fused FFN (w1 -> ReLU -> w2) + residual + LayerNorm, tiled over the hidden dim F
# ----------------------------------------------------------------------------

def _ffn_add_ln_kernel(x_ref, w1_ref, b1_ref, w2_ref, b2_ref, g_ref, be_ref, o_ref,
                       acc_ref, *, eps):
    f = pl.program_id(1)

    @pl.when(f == 0)
    def _():
        acc_ref[...] = jnp.zeros_like(acc_ref)

    x = x_ref[...]
    h = jnp.dot(x.astype(jnp.bfloat16), w1_ref[...].astype(jnp.bfloat16),
                preferred_element_type=jnp.float32) + b1_ref[...]
    h = jnp.maximum(h, 0.0)
    acc_ref[...] += jnp.dot(h.astype(jnp.bfloat16), w2_ref[...].astype(jnp.bfloat16),
                            preferred_element_type=jnp.float32)

    @pl.when(f == pl.num_programs(1) - 1)
    def _():
        z = acc_ref[...] + b2_ref[...] + x.astype(jnp.float32)
        mean = jnp.mean(z, axis=-1, keepdims=True)
        var = jnp.mean((z - mean) ** 2, axis=-1, keepdims=True)
        zn = (z - mean) * jax.lax.rsqrt(var + eps)
        o_ref[...] = (zn * g_ref[...] + be_ref[...]).astype(o_ref.dtype)


def ffn_add_layernorm(x, w1, b1, w2, b2, gamma, beta, eps=1e-5):
    """LayerNorm(x + W2 relu(W1 x + b1) + b2); F is a grid axis (no (tm,F) spill)."""
    D = x.shape[-1]
    F = w1.shape[1]
    orig = x.shape
    x2 = x.reshape(-1, D)
    M = x2.shape[0]
    tm = _tile(M, 256, 8)
    tf = _tile(F, 512, 128)
    out = pl.pallas_call(
        functools.partial(_ffn_add_ln_kernel, eps=eps),
        out_shape=jax.ShapeDtypeStruct((M, D), x.dtype),
        grid=(M // tm, F // tf),
        in_specs=[
            pl.BlockSpec((tm, D), lambda i, f: (i, 0)),
            pl.BlockSpec((D, tf), lambda i, f: (0, f)),
            pl.BlockSpec((1, tf), lambda i, f: (0, f)),
            pl.BlockSpec((tf, D), lambda i, f: (f, 0)),
            pl.BlockSpec((1, D), lambda i, f: (0, 0)),
            pl.BlockSpec((1, D), lambda i, f: (0, 0)),
            pl.BlockSpec((1, D), lambda i, f: (0, 0)),
        ],
        out_specs=pl.BlockSpec((tm, D), lambda i, f: (i, 0)),
        scratch_shapes=[pltpu.VMEM((tm, D), jnp.float32)],
        compiler_params=pltpu.CompilerParams(
            dimension_semantics=("parallel", "arbitrary"),
            vmem_limit_bytes=_VMEM_LIMIT),
    )(x2, w1, b1.reshape(1, F), w2, b2.reshape(1, D),
      gamma.reshape(1, D), beta.reshape(1, D))
    return out.reshape(orig)


# ----------------------------------------------------------------------------
# Fused prenet (Linear-ReLU-Linear-ReLU) + positional-encoding add, seq-tiled
# ----------------------------------------------------------------------------

def _prenet_pe_kernel(x_ref, w1_ref, b1_ref, w2_ref, b2_ref, pe_ref, o_ref):
    x = x_ref[...].astype(jnp.bfloat16)                       # (ts, num_mels)
    h = jnp.dot(x, w1_ref[...].astype(jnp.bfloat16),
                preferred_element_type=jnp.float32) + b1_ref[...]
    h = jnp.maximum(h, 0.0)
    y = jnp.dot(h.astype(jnp.bfloat16), w2_ref[...].astype(jnp.bfloat16),
                preferred_element_type=jnp.float32) + b2_ref[...]
    y = jnp.maximum(y, 0.0)
    o_ref[...] = (y + pe_ref[...]).astype(o_ref.dtype)


def prenet_pe(x, p, pe, out_dtype=jnp.bfloat16):
    """SpeechPrenet fused with the positional-encoding add (dropout omitted, eval)."""
    B, S, num_mels = x.shape
    hid = p["w1"].shape[1]
    e_in = p["w2"].shape[1]
    ts = _tile(S, 256, 8)
    return pl.pallas_call(
        _prenet_pe_kernel,
        out_shape=jax.ShapeDtypeStruct((B, S, e_in), out_dtype),
        grid=(B, S // ts),
        in_specs=[
            pl.BlockSpec((None, ts, num_mels), lambda b, si: (b, si, 0)),
            pl.BlockSpec((num_mels, hid), lambda b, si: (0, 0)),
            pl.BlockSpec((1, hid), lambda b, si: (0, 0)),
            pl.BlockSpec((hid, e_in), lambda b, si: (0, 0)),
            pl.BlockSpec((1, e_in), lambda b, si: (0, 0)),
            pl.BlockSpec((ts, e_in), lambda b, si: (si, 0)),
        ],
        out_specs=pl.BlockSpec((None, ts, e_in), lambda b, si: (b, si, 0)),
        compiler_params=pltpu.CompilerParams(
            dimension_semantics=("parallel", "parallel"),
            vmem_limit_bytes=_VMEM_LIMIT),
    )(x, p["w1"], p["b1"].reshape(1, hid), p["w2"], p["b2"].reshape(1, e_in), pe)


# ----------------------------------------------------------------------------
# Flash-style attention: grid (B, q_tiles, kv_tiles), online softmax, in-kernel masks,
# packed-QKV input (no HBM head transposes), lane-dense (tq, H*dh) output blocks,
# fully-masked KV tiles skipped.
# ----------------------------------------------------------------------------

def _flash_attn_kernel(lens_ref, q_ref, k_ref, v_ref, o_ref, m_sc, l_sc, acc_sc, *,
                       scale, causal, tq, tk):
    b, qi, ki = pl.program_id(0), pl.program_id(1), pl.program_id(2)

    @pl.when(ki == 0)
    def _():
        m_sc[...] = jnp.full_like(m_sc, -jnp.inf)
        l_sc[...] = jnp.zeros_like(l_sc)
        acc_sc[...] = jnp.zeros_like(acc_sc)

    length = lens_ref[b]
    kv_start = ki * tk
    # Skip KV tiles that are entirely beyond the valid length or strictly above the
    # causal diagonal.  Tile 0 is always processed so every query row keeps a finite
    # softmax denominator (fully-padded rows see a uniform softmax over -1e9 logits,
    # matching PyTorch's behaviour for all-masked rows).
    process = jnp.logical_or(ki == 0, kv_start < length)
    if causal:
        process = jnp.logical_and(process, kv_start <= qi * tq + (tq - 1))

    @pl.when(process)
    def _():
        row = jax.lax.broadcasted_iota(jnp.int32, (tq, tk), 0) + qi * tq
        col = jax.lax.broadcasted_iota(jnp.int32, (tq, tk), 1) + kv_start
        neg = jnp.float32(-1e9)
        bias = jnp.where(col < length, jnp.float32(0.0), neg)
        if causal:
            bias = bias + jnp.where(col <= row, jnp.float32(0.0), neg)

        # Blocks arrive token-major (t, H, dh); swap to head-major in-kernel (XLU) --
        # this replaces the previous full-activation HBM transpose round trips.
        q = jnp.swapaxes(q_ref[...], 0, 1).astype(jnp.bfloat16)   # (H, tq, dh)
        k = jnp.swapaxes(k_ref[...], 0, 1).astype(jnp.bfloat16)   # (H, tk, dh)
        v = jnp.swapaxes(v_ref[...], 0, 1).astype(jnp.bfloat16)   # (H, tk, dh)
        s = jnp.einsum("hqd,hkd->hqk", q, k, preferred_element_type=jnp.float32)
        s = s * scale + bias[None, :, :]

        m_prev = m_sc[...]
        m_new = jnp.maximum(m_prev, jnp.max(s, axis=-1, keepdims=True))
        alpha = jnp.exp(m_prev - m_new)
        p = jnp.exp(s - m_new)
        l_sc[...] = alpha * l_sc[...] + jnp.sum(p, axis=-1, keepdims=True)
        acc_sc[...] = alpha * acc_sc[...] + jnp.einsum(
            "hqk,hkd->hqd", p.astype(jnp.bfloat16), v,
            preferred_element_type=jnp.float32)
        m_sc[...] = m_new

    @pl.when(ki == pl.num_programs(2) - 1)
    def _():
        out = acc_sc[...] * pl.reciprocal(l_sc[...], approx=True)   # (H, tq, dh)
        out = jnp.swapaxes(out, 0, 1)                               # (tq, H, dh)
        o_ref[...] = out.reshape(out.shape[0], -1).astype(o_ref.dtype)  # lane-dense (tq, D)


def flash_attention_qkv(qkv, lens, causal):
    """Self-attention on packed projections. qkv: (B, S, 3, H, dh) -> (B, S, H*dh)."""
    B, S, _, H, dh = qkv.shape
    D = H * dh
    scale = 1.0 / math.sqrt(dh)
    tq = _tile(S, 256, 8)
    tk = _tile(S, 256, 8)
    kern = functools.partial(_flash_attn_kernel, scale=scale, causal=causal, tq=tq, tk=tk)
    return pl.pallas_call(
        kern,
        out_shape=jax.ShapeDtypeStruct((B, S, D), qkv.dtype),
        grid_spec=pltpu.PrefetchScalarGridSpec(
            num_scalar_prefetch=1,
            grid=(B, S // tq, S // tk),
            in_specs=[
                pl.BlockSpec((None, tq, None, H, dh), lambda b, qi, ki, l: (b, qi, 0, 0, 0)),
                pl.BlockSpec((None, tk, None, H, dh), lambda b, qi, ki, l: (b, ki, 1, 0, 0)),
                pl.BlockSpec((None, tk, None, H, dh), lambda b, qi, ki, l: (b, ki, 2, 0, 0)),
            ],
            out_specs=pl.BlockSpec((None, tq, D), lambda b, qi, ki, l: (b, qi, 0)),
            scratch_shapes=[
                pltpu.VMEM((H, tq, 1), jnp.float32),
                pltpu.VMEM((H, tq, 1), jnp.float32),
                pltpu.VMEM((H, tq, dh), jnp.float32),
            ],
        ),
        compiler_params=pltpu.CompilerParams(
            dimension_semantics=("parallel", "parallel", "arbitrary"),
            vmem_limit_bytes=_VMEM_LIMIT),
    )(lens, qkv, qkv, qkv)


def flash_attention_q_kv(q, kv, lens):
    """Cross-attention. q: (B, Sq, H, dh), kv: (B, Sk, 2, H, dh) -> (B, Sq, H*dh)."""
    B, Sq, H, dh = q.shape
    Sk = kv.shape[1]
    D = H * dh
    scale = 1.0 / math.sqrt(dh)
    tq = _tile(Sq, 256, 8)
    tk = _tile(Sk, 256, 8)
    kern = functools.partial(_flash_attn_kernel, scale=scale, causal=False, tq=tq, tk=tk)
    return pl.pallas_call(
        kern,
        out_shape=jax.ShapeDtypeStruct((B, Sq, D), q.dtype),
        grid_spec=pltpu.PrefetchScalarGridSpec(
            num_scalar_prefetch=1,
            grid=(B, Sq // tq, Sk // tk),
            in_specs=[
                pl.BlockSpec((None, tq, H, dh), lambda b, qi, ki, l: (b, qi, 0, 0)),
                pl.BlockSpec((None, tk, None, H, dh), lambda b, qi, ki, l: (b, ki, 0, 0, 0)),
                pl.BlockSpec((None, tk, None, H, dh), lambda b, qi, ki, l: (b, ki, 1, 0, 0)),
            ],
            out_specs=pl.BlockSpec((None, tq, D), lambda b, qi, ki, l: (b, qi, 0)),
            scratch_shapes=[
                pltpu.VMEM((H, tq, 1), jnp.float32),
                pltpu.VMEM((H, tq, 1), jnp.float32),
                pltpu.VMEM((H, tq, dh), jnp.float32),
            ],
        ),
        compiler_params=pltpu.CompilerParams(
            dimension_semantics=("parallel", "parallel", "arbitrary"),
            vmem_limit_bytes=_VMEM_LIMIT),
    )(lens, q, kv, kv)


# ----------------------------------------------------------------------------
# Postnet conv: im2col in VMEM -> one wide K=ksize*Cin matmul + folded BN (+ tanh)
# ----------------------------------------------------------------------------

def _conv1d_bn_kernel(x_ref, w_ref, b_ref, scale_ref, shift_ref, o_ref, xcol_ref, *,
                      ksize, pad, apply_tanh):
    L, cin = x_ref.shape
    # Build the zero-padded "same"-conv im2col block in VMEM, then one wide MXU matmul
    # instead of ksize shallow K=Cin matmuls.
    xcol_ref[...] = jnp.zeros_like(xcol_ref)
    for t in range(ksize):
        lo = max(0, pad - t)
        hi = min(L, L + pad - t)
        xcol_ref[lo:hi, t * cin:(t + 1) * cin] = x_ref[lo - pad + t: hi - pad + t, :]
    acc = jnp.dot(xcol_ref[...].astype(jnp.bfloat16), w_ref[...].astype(jnp.bfloat16),
                  preferred_element_type=jnp.float32)
    acc = acc + b_ref[...]
    acc = acc * scale_ref[...] + shift_ref[...]          # folded eval-mode BatchNorm1d
    if apply_tanh:
        acc = jnp.tanh(acc)
    o_ref[...] = acc.astype(o_ref.dtype)


def conv1d_bn(x, w2d, b, scale, shift, ksize, apply_tanh, out_dtype=None):
    """Same-padded 1D conv + folded eval-mode BN (+ optional tanh).
    x: (B, L, Cin); w2d: (ksize*Cin, Cout), rows ordered tap-major then channel."""
    B, L, Cin = x.shape
    Cout = w2d.shape[1]
    pad = (ksize - 1) // 2
    out_dtype = out_dtype or x.dtype
    kern = functools.partial(_conv1d_bn_kernel, ksize=ksize, pad=pad, apply_tanh=apply_tanh)
    # TODO(synk): tile L (with a ksize-1 halo) for long sequences / v7x dual-core use.
    return pl.pallas_call(
        kern,
        out_shape=jax.ShapeDtypeStruct((B, L, Cout), out_dtype),
        grid=(B,),
        in_specs=[
            pl.BlockSpec((None, L, Cin), lambda bb: (bb, 0, 0)),
            pl.BlockSpec((ksize * Cin, Cout), lambda bb: (0, 0)),
            pl.BlockSpec((1, Cout), lambda bb: (0, 0)),
            pl.BlockSpec((1, Cout), lambda bb: (0, 0)),
            pl.BlockSpec((1, Cout), lambda bb: (0, 0)),
        ],
        out_specs=pl.BlockSpec((None, L, Cout), lambda bb: (bb, 0, 0)),
        scratch_shapes=[pltpu.VMEM((L, ksize * Cin), jnp.float32)],
        compiler_params=pltpu.CompilerParams(
            dimension_semantics=("parallel",), vmem_limit_bytes=_VMEM_LIMIT),
    )(x, w2d, b.reshape(1, Cout), scale.reshape(1, Cout), shift.reshape(1, Cout))


# ----------------------------------------------------------------------------
# Model pieces built from the kernels (glue in plain JAX; reshapes only, no transposes)
# ----------------------------------------------------------------------------

def self_mha_block(x, p, lens, nhead, causal, ln_g, ln_b):
    B, S, D = x.shape
    dh = D // nhead
    qkv = matmul_bias(x, p["w_qkv"], p["b_qkv"], out_dtype=jnp.bfloat16)   # (B,S,3D)
    qkv = qkv.reshape(B, S, 3, nhead, dh)            # free reshape, no HBM transpose
    o = flash_attention_qkv(qkv, lens, causal)       # (B,S,D) lane-dense bf16
    return proj_add_layernorm(o, p["wo"], p["bo"], x, ln_g, ln_b)


def cross_mha_block(y, mem, p, lens, nhead, ln_g, ln_b):
    B, Sq, D = y.shape
    Sk = mem.shape[1]
    dh = D // nhead
    q = matmul_bias(y, p["wq"], p["bq"], out_dtype=jnp.bfloat16).reshape(B, Sq, nhead, dh)
    kv = matmul_bias(mem, p["w_kv"], p["b_kv"], out_dtype=jnp.bfloat16)
    kv = kv.reshape(B, Sk, 2, nhead, dh)
    o = flash_attention_q_kv(q, kv, lens)
    return proj_add_layernorm(o, p["wo"], p["bo"], y, ln_g, ln_b)


def encoder_layer(x, p, lens, nhead):
    x = self_mha_block(x, p["self"], lens, nhead, False, p["ln1_g"], p["ln1_b"])
    return ffn_add_layernorm(x, p["ffn_w1"], p["ffn_b1"], p["ffn_w2"], p["ffn_b2"],
                             p["ln2_g"], p["ln2_b"])


def decoder_layer(y, mem, p, lens, nhead):
    y = self_mha_block(y, p["self"], lens, nhead, True, p["ln1_g"], p["ln1_b"])
    y = cross_mha_block(y, mem, p["cross"], lens, nhead, p["ln2_g"], p["ln2_b"])
    return ffn_add_layernorm(y, p["ffn_w1"], p["ffn_b1"], p["ffn_w2"], p["ffn_b2"],
                             p["ln3_g"], p["ln3_b"])


def speech_transformer_forward(params, cfg, mel, mel_len):
    """Equivalent of SpeechTransformer.forward(mel, mel_len).
    Returns (pre_pred, post_pred, stop_pred)."""
    B, S, num_mels = mel.shape
    nhead = cfg["nhead"]
    pe = params["pos_emb"][:S]                                           # (S, e_in)

    # ---------------- encode ----------------
    x = prenet_pe(mel, params["prenet"], pe)                             # bf16 trunk
    for lp in params["enc_layers"]:
        x = encoder_layer(x, lp, mel_len, nhead)
    enc_out = x

    # ---------------- decode_sequence (teacher forcing) ----------------
    # NOTE: decoder self-attn pad mask and cross-attn memory mask both use mel_len;
    #       this is correct under teacher forcing where target length == mel length.
    sos = jnp.zeros((B, 1, num_mels), mel.dtype)
    tgt_input = jnp.concatenate([sos, mel[:, :-1, :]], axis=1)
    y = prenet_pe(tgt_input, params["prenet"], pe)
    for lp in params["dec_layers"]:
        y = decoder_layer(y, enc_out, lp, mel_len, nhead)

    # ------------- postnet.mel_and_stop (merged, lane-padded head) -------------
    ms = matmul_bias(y, params["mel_stop_w"], params["mel_stop_b"],
                     out_dtype=jnp.float32)                              # (B, S, Npad)
    dec_out = ms[..., :num_mels]
    stop_pred = ms[..., num_mels]

    # ---------------- postprocess: 5-layer conv postnet residual ----------------
    r = dec_out
    n_conv = len(params["postnet_convs"])
    for i, cp in enumerate(params["postnet_convs"]):
        r = conv1d_bn(r, cp["w2d"], cp["b"], cp["scale"], cp["shift"],
                      ksize=cp["ksize"], apply_tanh=(i < n_conv - 1),
                      out_dtype=jnp.float32)
    post_pred = dec_out + r

    return dec_out, post_pred, stop_pred


# ----------------------------------------------------------------------------
# Deterministic parameter initialization (weights stored bf16; biases/LN/BN f32)
# ----------------------------------------------------------------------------

def _sinusoid_pe(max_len, d):
    pos = np.arange(max_len)[:, None].astype(np.float64)
    i = np.arange(d)[None, :].astype(np.float64)
    angle = pos / np.power(10000.0, (2.0 * (i // 2)) / d)
    pe = np.zeros((max_len, d), np.float32)
    pe[:, 0::2] = np.sin(angle[:, 0::2])
    pe[:, 1::2] = np.cos(angle[:, 1::2])
    return jnp.asarray(pe)


def init_params(key, *, num_mels, s_pre_hid, e_in, nhead, ffn_dim, num_layers,
                hidden, max_len=512):
    keys = list(jax.random.split(key, 4096))
    kit = iter(keys)

    def dense(din, dout, scale=0.02):
        w = (scale * jax.random.normal(next(kit), (din, dout), jnp.float32)
             ).astype(jnp.bfloat16)
        b = jnp.zeros((dout,), jnp.float32)
        return w, b

    def self_mha_params(d):
        w_qkv, b_qkv = dense(d, 3 * d)
        wo, bo = dense(d, d)
        return {"w_qkv": w_qkv, "b_qkv": b_qkv, "wo": wo, "bo": bo}

    def cross_mha_params(d):
        wq, bq = dense(d, d)
        w_kv, b_kv = dense(d, 2 * d)
        wo, bo = dense(d, d)
        return {"wq": wq, "bq": bq, "w_kv": w_kv, "b_kv": b_kv, "wo": wo, "bo": bo}

    def ln(d):
        return jnp.ones((d,), jnp.float32), jnp.zeros((d,), jnp.float32)

    def enc_layer_params():
        w1, b1 = dense(e_in, ffn_dim)
        w2, b2 = dense(ffn_dim, e_in)
        g1, be1 = ln(e_in)
        g2, be2 = ln(e_in)
        return {"self": self_mha_params(e_in),
                "ln1_g": g1, "ln1_b": be1,
                "ffn_w1": w1, "ffn_b1": b1, "ffn_w2": w2, "ffn_b2": b2,
                "ln2_g": g2, "ln2_b": be2}

    def dec_layer_params():
        w1, b1 = dense(e_in, ffn_dim)
        w2, b2 = dense(ffn_dim, e_in)
        g1, be1 = ln(e_in)
        g2, be2 = ln(e_in)
        g3, be3 = ln(e_in)
        return {"self": self_mha_params(e_in),
                "cross": cross_mha_params(e_in),
                "ln1_g": g1, "ln1_b": be1,
                "ln2_g": g2, "ln2_b": be2,
                "ffn_w1": w1, "ffn_b1": b1, "ffn_w2": w2, "ffn_b2": b2,
                "ln3_g": g3, "ln3_b": be3}

    pre_w1, pre_b1 = dense(num_mels, s_pre_hid)
    pre_w2, pre_b2 = dense(s_pre_hid, e_in)

    # Merged mel+stop head, lane-padded to a multiple of 128 for unmasked stores.
    n_ms = num_mels + 1
    n_pad = _round_up(n_ms, 128)
    w_ms = 0.02 * jax.random.normal(next(kit), (e_in, n_ms), jnp.float32)
    mel_stop_w = jnp.zeros((e_in, n_pad), jnp.float32).at[:, :n_ms].set(w_ms)
    mel_stop_w = mel_stop_w.astype(jnp.bfloat16)
    mel_stop_b = jnp.zeros((n_pad,), jnp.float32)

    # Tacotron2-style postnet: 5 conv layers, kernel 5, BN (eval stats) + tanh (last no tanh)
    bn_scale = 1.0 / math.sqrt(1.0 + 1e-5)
    ksize = 5
    conv_dims = [(num_mels, hidden)] + [(hidden, hidden)] * 3 + [(hidden, num_mels)]
    convs = []
    for cin, cout in conv_dims:
        w = 0.02 * jax.random.normal(next(kit), (ksize, cin, cout), jnp.float32)
        convs.append({"w2d": w.reshape(ksize * cin, cout).astype(jnp.bfloat16),
                      "ksize": ksize,
                      "b": jnp.zeros((cout,), jnp.float32),
                      "scale": jnp.full((cout,), bn_scale, jnp.float32),
                      "shift": jnp.zeros((cout,), jnp.float32)})

    return {"prenet": {"w1": pre_w1, "b1": pre_b1, "w2": pre_w2, "b2": pre_b2},
            "pos_emb": _sinusoid_pe(max_len, e_in),
            "enc_layers": [enc_layer_params() for _ in range(num_layers)],
            "dec_layers": [dec_layer_params() for _ in range(num_layers)],
            "mel_stop_w": mel_stop_w, "mel_stop_b": mel_stop_b,
            "postnet_convs": convs}


# ----------------------------------------------------------------------------
# Main
# ----------------------------------------------------------------------------

if __name__ == "__main__":
    B, S = 2, 8
    cfg = dict(num_mels=16, s_pre_hid=32, e_in=32, nhead=2, ffn_dim=64,
               num_layers=2, hidden=32)

    key = jax.random.PRNGKey(0)
    pkey, xkey = jax.random.split(key)

    params = init_params(pkey, num_mels=cfg["num_mels"], s_pre_hid=cfg["s_pre_hid"],
                         e_in=cfg["e_in"], nhead=cfg["nhead"], ffn_dim=cfg["ffn_dim"],
                         num_layers=cfg["num_layers"], hidden=cfg["hidden"])

    mel = jax.random.normal(xkey, (B, S, cfg["num_mels"]), jnp.float32)
    mel_len = jnp.array([S, S - 2], jnp.int32)

    pre_pred, post_pred, stop_pred = speech_transformer_forward(params, cfg, mel, mel_len)
    jax.block_until_ready((pre_pred, post_pred, stop_pred))

    assert pre_pred.shape == (B, S, cfg["num_mels"])
    assert post_pred.shape == (B, S, cfg["num_mels"])
    assert stop_pred.shape == (B, S)
    assert jnp.all(jnp.isfinite(pre_pred)) and jnp.all(jnp.isfinite(post_pred))
    assert jnp.all(jnp.isfinite(stop_pred))

    print("KERNEL_OK")
</pallas_src>

<mosaic_0001>
module attributes {stable_mosaic.version = 11 : i64} {
  func.func @_prenet_pe_kernel(%arg0: i32, %arg1: i32, %arg2: memref<1x8x16xf32, #tpu.memory_space<vmem>>, %arg3: memref<16x32xbf16, #tpu.memory_space<vmem>>, %arg4: memref<1x32xf32, #tpu.memory_space<vmem>>, %arg5: memref<32x32xbf16, #tpu.memory_space<vmem>>, %arg6: memref<1x32xf32, #tpu.memory_space<vmem>>, %arg7: memref<8x32xf32, #tpu.memory_space<vmem>>, %arg8: memref<1x8x32xbf16, #tpu.memory_space<vmem>>) attributes {dimension_semantics = [#tpu.dimension_semantics<parallel>, #tpu.dimension_semantics<parallel>], iteration_bounds = array<i64: 2, 1>, scalar_prefetch = 0 : i64, scratch_operands = 0 : i64, tpu.core_type = #tpu.core_type<tc>, window_params = [{transform_indices = @transform_0, window_bounds = array<i64: 1, 8, 16>}, {pipeline_mode = #tpu.pipeline_mode<synchronous>, transform_indices = @transform_1, window_bounds = array<i64: 16, 32>}, {pipeline_mode = #tpu.pipeline_mode<synchronous>, transform_indices = @transform_2, window_bounds = array<i64: 1, 32>}, {pipeline_mode = #tpu.pipeline_mode<synchronous>, transform_indices = @transform_3, window_bounds = array<i64: 32, 32>}, {pipeline_mode = #tpu.pipeline_mode<synchronous>, transform_indices = @transform_4, window_bounds = array<i64: 1, 32>}, {transform_indices = @transform_5, window_bounds = array<i64: 8, 32>}, {transform_indices = @transform_6, window_bounds = array<i64: 1, 8, 32>}]} {
    %c0 = arith.constant 0 : index
    %c0_0 = arith.constant 0 : index
    %c0_1 = arith.constant 0 : index
    %0 = vector.load %arg2[%c0, %c0_0, %c0_1] : memref<1x8x16xf32, #tpu.memory_space<vmem>>, vector<1x8x16xf32>
    %1 = vector.shape_cast %0 : vector<1x8x16xf32> to vector<8x16xf32>
    %2 = arith.truncf %1 : vector<8x16xf32> to vector<8x16xbf16>
    %c0_2 = arith.constant 0 : index
    %c0_3 = arith.constant 0 : index
    %3 = vector.load %arg3[%c0_2, %c0_3] : memref<16x32xbf16, #tpu.memory_space<vmem>>, vector<16x32xbf16>
    %cst = arith.constant dense<0.000000e+00> : vector<8x32xf32>
    %4 = tpu.matmul %2, %3, %cst {dimension_numbers = #tpu.dot_dimension_numbers<[1], [0], [0], [1], [0, 0, 1, 1], [], []>} : vector<8x16xbf16>, vector<16x32xbf16>, vector<8x32xf32> -> vector<8x32xf32>
    %c0_4 = arith.constant 0 : index
    %c0_5 = arith.constant 0 : index
    %5 = vector.load %arg4[%c0_4, %c0_5] : memref<1x32xf32, #tpu.memory_space<vmem>>, vector<1x32xf32>
    %6 = vector.broadcast %5 : vector<1x32xf32> to vector<8x32xf32>
    %7 = arith.addf %4, %6 : vector<8x32xf32>
    %cst_6 = arith.constant 0.000000e+00 : f32
    %8 = vector.broadcast %cst_6 : f32 to vector<8x32xf32>
    %9 = arith.maximumf %7, %8 : vector<8x32xf32>
    %10 = arith.truncf %9 : vector<8x32xf32> to vector<8x32xbf16>
    %c0_7 = arith.constant 0 : index
    %c0_8 = arith.constant 0 : index
    %11 = vector.load %arg5[%c0_7, %c0_8] : memref<32x32xbf16, #tpu.memory_space<vmem>>, vector<32x32xbf16>
    %cst_9 = arith.constant dense<0.000000e+00> : vector<8x32xf32>
    %12 = tpu.matmul %10, %11, %cst_9 {dimension_numbers = #tpu.dot_dimension_numbers<[1], [0], [0], [1], [0, 0, 1, 1], [], []>} : vector<8x32xbf16>, vector<32x32xbf16>, vector<8x32xf32> -> vector<8x32xf32>
    %c0_10 = arith.constant 0 : index
    %c0_11 = arith.constant 0 : index
    %13 = vector.load %arg6[%c0_10, %c0_11] : memref<1x32xf32, #tpu.memory_space<vmem>>, vector<1x32xf32>
    %14 = vector.broadcast %13 : vector<1x32xf32> to vector<8x32xf32>
    %15 = arith.addf %12, %14 : vector<8x32xf32>
    %cst_12 = arith.constant 0.000000e+00 : f32
    %16 = vector.broadcast %cst_12 : f32 to vector<8x32xf32>
    %17 = arith.maximumf %15, %16 : vector<8x32xf32>
    %c0_13 = arith.constant 0 : index
    %c0_14 = arith.constant 0 : index
    %18 = vector.load %arg7[%c0_13, %c0_14] : memref<8x32xf32, #tpu.memory_space<vmem>>, vector<8x32xf32>
    %19 = arith.addf %17, %18 : vector<8x32xf32>
    %20 = arith.truncf %19 : vector<8x32xf32> to vector<8x32xbf16>
    %c0_15 = arith.constant 0 : index
    %c0_16 = arith.constant 0 : index
    %c0_17 = arith.constant 0 : index
    %21 = vector.load %arg8[%c0_15, %c0_16, %c0_17] : memref<1x8x32xbf16, #tpu.memory_space<vmem>>, vector<1x8x32xbf16>
    %22 = vector.shape_cast %21 : vector<1x8x32xbf16> to vector<8x32xbf16>
    %23 = vector.shape_cast %20 : vector<8x32xbf16> to vector<1x8x32xbf16>
    tpu.vector_store %arg8[%c0_15, %c0_16, %c0_17], %23 {strides = array<i32>} : memref<1x8x32xbf16, #tpu.memory_space<vmem>>, vector<1x8x32xbf16>,
    return
  }
  func.func @transform_0(%arg0: i32, %arg1: i32) -> (i32, i32, i32) {
    %c0_i32 = arith.constant 0 : i32
    %c0_i32_0 = arith.constant 0 : i32
    return %arg0, %arg1, %c0_i32 : i32, i32, i32
  }
  func.func @transform_1(%arg0: i32, %arg1: i32) -> (i32, i32) {
    %c0_i32 = arith.constant 0 : i32
    %c0_i32_0 = arith.constant 0 : i32
    %c0_i32_1 = arith.constant 0 : i32
    return %c0_i32, %c0_i32_0 : i32, i32
  }
  func.func @transform_2(%arg0: i32, %arg1: i32) -> (i32, i32) {
    %c0_i32 = arith.constant 0 : i32
    %c0_i32_0 = arith.constant 0 : i32
    %c0_i32_1 = arith.constant 0 : i32
    return %c0_i32, %c0_i32_0 : i32, i32
  }
  func.func @transform_3(%arg0: i32, %arg1: i32) -> (i32, i32) {
    %c0_i32 = arith.constant 0 : i32
    %c0_i32_0 = arith.constant 0 : i32
    %c0_i32_1 = arith.constant 0 : i32
    return %c0_i32, %c0_i32_0 : i32, i32
  }
  func.func @transform_4(%arg0: i32, %arg1: i32) -> (i32, i32) {
    %c0_i32 = arith.constant 0 : i32
    %c0_i32_0 = arith.constant 0 : i32
    %c0_i32_1 = arith.constant 0 : i32
    return %c0_i32, %c0_i32_0 : i32, i32
  }
  func.func @transform_5(%arg0: i32, %arg1: i32) -> (i32, i32) {
    %c0_i32 = arith.constant 0 : i32
    %c0_i32_0 = arith.constant 0 : i32
    return %arg1, %c0_i32 : i32, i32
  }
  func.func @transform_6(%arg0: i32, %arg1: i32) -> (i32, i32, i32) {
    %c0_i32 = arith.constant 0 : i32
    %c0_i32_0 = arith.constant 0 : i32
    return %arg0, %arg1, %c0_i32 : i32, i32, i32
  }
}

</mosaic_0001>

<llo_original>
// kernel: tpu_custom_call.1
$region0: #{tpu_custom_call.1}
  #allocation0 [shape = 'u32[]', space=smem, size = 0x4, offset = 0x4, fixed_abs, tag = 'smem constant byte address 0x4 - core index']
  #allocation1 [shape = 'u32[72,128]{1,0:T(1,128)}', space=vmem, size = 0x9000, scoped, tag = 'internal scratch']
  %s0 = inlined_call_operand.hbm [shape: f32[2,8,16], index: 0, kind: input, shape index: {}]
  %s1 = inlined_call_operand.hbm [shape: bf16[16,32], index: 1, kind: input, shape index: {}]
  %s2 = inlined_call_operand.vmem [shape: f32[1,32], index: 2, kind: input, shape index: {}]
  %s3 = inlined_call_operand.hbm [shape: bf16[32,32], index: 3, kind: input, shape index: {}]
  %s4 = inlined_call_operand.vmem [shape: f32[1,32], index: 4, kind: input, shape index: {}]
  %s5 = inlined_call_operand.hbm [shape: f32[8,32], index: 5, kind: input, shape index: {}]
  %s6 = inlined_call_operand.hbm [shape: bf16[2,8,32], index: 6, kind: output, shape index: {}]
  %s7 = sld [smem:[#allocation0]]
  $region73: #{tpu_custom_call.1} parent=0
    _
  %s9 = ssub.s32 1, %s7
  %s10 = scalar_select 0, %s9, %s7
  $region1: #{tpu_custom_call.1} parent=0
    #allocation2 [shape = 'u8[8192]{0}', space=vmem, size = 0x2000, scoped, tag = 'input window, operand 0']
    #allocation3 [shape = 's32[2]{0}', space=sflag, size = 0x8, scoped, tag = 'scoped memory for tpu_custom_call.1']
    #allocation4 [shape = 's32[2]{0}', space=sflag, size = 0x8, scoped, tag = 'scoped memory for tpu_custom_call.1']
    #allocation5 [shape = 'u8[4096]{0}', space=vmem, size = 0x1000, scoped, tag = 'input window, operand 1, single buffered']
    #allocation6 [shape = 's32[1]{0}', space=sflag, size = 0x4, scoped, tag = 'scoped memory for tpu_custom_call.1']
    #allocation7 [shape = 'u8[8192]{0}', space=vmem, size = 0x2000, scoped, tag = 'input window, operand 3, single buffered']
    #allocation8 [shape = 'u8[4096]{0}', space=vmem, size = 0x1000, scoped, tag = 'input window, operand 5, single buffered']
    #allocation9 [shape = 's32[1]{0}', space=sflag, size = 0x4, scoped, tag = 'scoped memory for tpu_custom_call.1']
    #allocation10 [shape = 'u8[4096]{0}', space=vmem, size = 0x1000, scoped, tag = 'output window, operand 0']
    %11 = vsyncpa [#allocation3], 0
    %s12 = scalar_lea.sflag [#allocation3], 1
    %13 = vsyncpa %s12, 0
    %14 = vsyncpa [#allocation6], 0
    %15 = vsyncpa [#allocation9], 0
    %16 = vsyncpa [#allocation4], 0
    %s17 = scalar_lea.sflag [#allocation4], 1
    %18 = vsyncpa %s17, 0
    loop: start=0, step=1, limit=4
    $region2: #{tpu_custom_call.1} parent=1 // loop_pre_header
      _
    $region3: #{tpu_custom_call.1} parent=1 // loop_header
      %s20 = sphi 0, %s24
      %p21 = scmp.ge.s32.totalorder %s20, 4
      %s27 = sphi 0, %s39
      %s28 = sphi 0, %s35
      %s29 = sphi 0, %s27
      %s30 = sphi 0, %s28
      %s31 = sphi 0, %s29
      %s32 = sphi 0, %s30
      %s44 = sphi 0, %s46
      %s47 = sphi 0, %s44
      %s48 = sphi 0, %s47
      %s64 = sphi 0, %s48
      %s68 = sphi 0, %s68
      %s70 = sphi 0, %s68
      %s71 = sphi 0, %s70
      %s85 = sphi 0, %s71
      %s89 = sphi 0, %s89
      %s91 = sphi 0, %s89
      %s92 = sphi 0, %s91
      %s106 = sphi 0, %s92
      %s110 = sphi 0, %s110
      %s112 = sphi 0, %s110
      %s113 = sphi 0, %s112
      %s127 = sphi 0, %s113
      %s131 = sphi 0, %s131
      %s133 = sphi 0, %s131
      %s134 = sphi 0, %s133
      %s148 = sphi 0, %s134
      %s154 = sphi 0, %s156
      %s157 = sphi 0, %s154
      %s158 = sphi 0, %s157
      %s174 = sphi 0, %s158
      %s182 = sphi 0, %s184
      %s185 = sphi 0, %s182
      %s186 = sphi 0, %s185
      %s202 = sphi 0, %s186
    $region4: #{tpu_custom_call.1} parent=1 // loop_header_branch
      %23 = sbr.rel (%p21) target = $region8
    $region5: #{tpu_custom_call.1} parent=1 // loop_body
      %s25 = ssub.s32 %s20, 1
      %s26 = ssub.s32 %s20, 2
      %s33 = sadd.s32 1, %s28
      %p34 = scmp.ge.s32.totalorder %s33, 1
      %s35 = scalar_select %p34, 0, %s33
      %s36 = sadd.s32 1, %s27
      %s37 = scalar_select %p34, %s36, %s27
      %p38 = scmp.ge.s32.totalorder %s37, 2
      %s39 = scalar_select %p38, 0, %s37
      %s40 = ssub.s32 %s27, %s39
      %s41 = ssub.s32 %s28, %s35
      %s42 = sor.u32 %s40, %s41
      %p43 = scmp.eq.s32.totalorder %s42, 0
      %s45 = sadd.s32 %s44, 1
      %s46 = scalar_select %p43, %s44, %s45
      %p49 = pneg %p43
      %p50 = scmp.eq.s32.totalorder %s20, 1
      %p51 = por %p49, %p50
      %p52 = scmp.ne.s32.totalorder %s44, %s47
      %p53 = scmp.eq.s32.totalorder %s20, 0
      %p54 = por %p52, %p53
      %p55 = scmp.ne.s32.totalorder %s44, %s47
      %p56 = scmp.eq.s32.totalorder %s25, 1
      %p57 = por %p55, %p56
      %p58 = scmp.ne.s32.totalorder %s47, %s48
      %p59 = scmp.eq.s32.totalorder %s25, 0
      %p60 = por %p58, %p59
      %p61 = scmp.ne.s32.totalorder %s47, %s48
      %p62 = scmp.eq.s32.totalorder %s26, 1
      %p63 = por %p61, %p62
      %p65 = scmp.ne.s32.totalorder %s48, %s64
      %p66 = scmp.eq.s32.totalorder %s26, 0
      %p67 = por %p65, %p66
      %s69 = sadd.s32 %s68, 1
      %p72 = scmp.eq.s32.totalorder %s20, 1
      %p73 = scmp.ne.s32.totalorder %s68, %s70
      %p74 = scmp.eq.s32.totalorder %s20, 0
      %p75 = por %p73, %p74
      %p76 = scmp.ne.s32.totalorder %s68, %s70
      %p77 = scmp.eq.s32.totalorder %s25, 1
      %p78 = por %p76, %p77
      %p79 = scmp.ne.s32.totalorder %s70, %s71
      %p80 = scmp.eq.s32.totalorder %s25, 0
      %p81 = por %p79, %p80
      %p82 = scmp.ne.s32.totalorder %s70, %s71
      %p83 = scmp.eq.s32.totalorder %s26, 1
      %p84 = por %p82, %p83
      %p86 = scmp.ne.s32.totalorder %s71, %s85
      %p87 = scmp.eq.s32.totalorder %s26, 0
      %p88 = por %p86, %p87
      %s90 = sadd.s32 %s89, 1
      %p93 = scmp.eq.s32.totalorder %s20, 1
      %p94 = scmp.ne.s32.totalorder %s89, %s91
      %p95 = scmp.eq.s32.totalorder %s20, 0
      %p96 = por %p94, %p95
      %p97 = scmp.ne.s32.totalorder %s89, %s91
      %p98 = scmp.eq.s32.totalorder %s25, 1
      %p99 = por %p97, %p98
      %p100 = scmp.ne.s32.totalorder %s91, %s92
      %p101 = scmp.eq.s32.totalorder %s25, 0
      %p102 = por %p100, %p101
      %p103 = scmp.ne.s32.totalorder %s91, %s92
      %p104 = scmp.eq.s32.totalorder %s26, 1
      %p105 = por %p103, %p104
      %p107 = scmp.ne.s32.totalorder %s92, %s106
      %p108 = scmp.eq.s32.totalorder %s26, 0
      %p109 = por %p107, %p108
      %s111 = sadd.s32 %s110, 1
      %p114 = scmp.eq.s32.totalorder %s20, 1
      %p115 = scmp.ne.s32.totalorder %s110, %s112
      %p116 = scmp.eq.s32.totalorder %s20, 0
      %p117 = por %p115, %p116
      %p118 = scmp.ne.s32.totalorder %s110, %s112
      %p119 = scmp.eq.s32.totalorder %s25, 1
      %p120 = por %p118, %p119
      %p121 = scmp.ne.s32.totalorder %s112, %s113
      %p122 = scmp.eq.s32.totalorder %s25, 0
      %p123 = por %p121, %p122
      %p124 = scmp.ne.s32.totalorder %s112, %s113
      %p125 = scmp.eq.s32.totalorder %s26, 1
      %p126 = por %p124, %p125
      %p128 = scmp.ne.s32.totalorder %s113, %s127
      %p129 = scmp.eq.s32.totalorder %s26, 0
      %p130 = por %p128, %p129
      %s132 = sadd.s32 %s131, 1
      %p135 = scmp.eq.s32.totalorder %s20, 1
      %p136 = scmp.ne.s32.totalorder %s131, %s133
      %p137 = scmp.eq.s32.totalorder %s20, 0
      %p138 = por %p136, %p137
      %p139 = scmp.ne.s32.totalorder %s131, %s133
      %p140 = scmp.eq.s32.totalorder %s25, 1
      %p141 = por %p139, %p140
      %p142 = scmp.ne.s32.totalorder %s133, %s134
      %p143 = scmp.eq.s32.totalorder %s25, 0
      %p144 = por %p142, %p143
      %p145 = scmp.ne.s32.totalorder %s133, %s134
      %p146 = scmp.eq.s32.totalorder %s26, 1
      %p147 = por %p145, %p146
      %p149 = scmp.ne.s32.totalorder %s134, %s148
      %p150 = scmp.eq.s32.totalorder %s26, 0
      %p151 = por %p149, %p150
      %s152 = ssub.s32 %s28, %s35
      %p153 = scmp.eq.s32.totalorder %s152, 0
      %s155 = sadd.s32 %s154, 1
      %s156 = scalar_select %p153, %s154, %s155
      %p159 = pneg %p153
      %p160 = scmp.eq.s32.totalorder %s20, 1
      %p161 = por %p159, %p160
      %p162 = scmp.ne.s32.totalorder %s154, %s157
      %p163 = scmp.eq.s32.totalorder %s20, 0
      %p164 = por %p162, %p163
      %p165 = scmp.ne.s32.totalorder %s154, %s157
      %p166 = scmp.eq.s32.totalorder %s25, 1
      %p167 = por %p165, %p166
      %p168 = scmp.ne.s32.totalorder %s157, %s158
      %p169 = scmp.eq.s32.totalorder %s25, 0
      %p170 = por %p168, %p169
      %p171 = scmp.ne.s32.totalorder %s157, %s158
      %p172 = scmp.eq.s32.totalorder %s26, 1
      %p173 = por %p171, %p172
      %p175 = scmp.ne.s32.totalorder %s158, %s174
      %p176 = scmp.eq.s32.totalorder %s26, 0
      %p177 = por %p175, %p176
      %s178 = ssub.s32 %s27, %s39
      %s179 = ssub.s32 %s28, %s35
      %s180 = sor.u32 %s178, %s179
      %p181 = scmp.eq.s32.totalorder %s180, 0
      %s183 = sadd.s32 %s182, 1
      %s184 = scalar_select %p181, %s182, %s183
      %p187 = pneg %p181
      %p188 = scmp.eq.s32.totalorder %s20, 1
      %p189 = por %p187, %p188
      %p190 = scmp.ne.s32.totalorder %s182, %s185
      %p191 = scmp.eq.s32.totalorder %s20, 0
      %p192 = por %p190, %p191
      %p193 = scmp.ne.s32.totalorder %s182, %s185
      %p194 = scmp.eq.s32.totalorder %s25, 1
      %p195 = por %p193, %p194
      %p196 = scmp.ne.s32.totalorder %s185, %s186
      %p197 = scmp.eq.s32.totalorder %s25, 0
      %p198 = por %p196, %p197
      %p199 = scmp.ne.s32.totalorder %s185, %s186
      %p200 = scmp.eq.s32.totalorder %s26, 1
      %p201 = por %p199, %p200
      %p203 = scmp.ne.s32.totalorder %s186, %s202
      %p204 = scmp.eq.s32.totalorder %s26, 0
      %p205 = por %p203, %p204
      %p206 = scmp.le.s32.totalorder 1, %s20
      %p207 = scmp.lt.s32.totalorder %s20, 3
      %p208 = pnand %p206, %p207
      %p209 = pneg %p208
      // Predicated region
      $region9: #{tpu_custom_call.1} parent=5 // pred_check
        _
      $region10: #{tpu_custom_call.1} parent=5 // pred_check_branch
        %211 = sbr.rel (%p208) target = $region12
      $region11: #{tpu_custom_call.1} parent=5 // pred_region
        %s212 = ssub.s32 %s20, 1
        // Predicated region
        $region13: #{tpu_custom_call.1} parent=11 // pred_check
          %p213 = pneg %p81
        $region14: #{tpu_custom_call.1} parent=11 // pred_check_branch
          %215 = sbr.rel (%p213) target = $region16
        $region15: #{tpu_custom_call.1} parent=11 // pred_region
          %217 = vsyncadd [#allocation6], 0
          %s218 = sshll.u32 %s1, 4
          %s219 = int_to_ptr.hbm [resolvable:$true] %s218
          %s220 = sshll.u32 [#allocation5], 4
          %s221 = int_to_ptr.vmem [resolvable:$true] %s220
          %226 = dma.hbm_to_vmem [thread:$0]  %s219, 128, %s221, [#allocation6], 64, 64, 4
        $region16: #{tpu_custom_call.1} parent=11 // pred_fallthru
          _
        // Predicated region
        $region17: #{tpu_custom_call.1} parent=11 // pred_check
          %p227 = pneg %p102
        $region18: #{tpu_custom_call.1} parent=11 // pred_check_branch
          %229 = sbr.rel (%p227) target = $region20
        $region19: #{tpu_custom_call.1} parent=11 // pred_region
          _
        $region20: #{tpu_custom_call.1} parent=11 // pred_fallthru
          _
        // Predicated region
        $region21: #{tpu_custom_call.1} parent=11 // pred_check
          %p230 = pneg %p123
        $region22: #{tpu_custom_call.1} parent=11 // pred_check_branch
          %232 = sbr.rel (%p230) target = $region24
        $region23: #{tpu_custom_call.1} parent=11 // pred_region
          %234 = vsyncadd [#allocation6], 0
          %s235 = sshll.u32 %s3, 4
          %s236 = int_to_ptr.hbm [resolvable:$true] %s235
          %s237 = sshll.u32 [#allocation7], 4
          %s238 = int_to_ptr.vmem [resolvable:$true] %s237
          %243 = dma.hbm_to_vmem [thread:$0]  %s236, 256, %s238, [#allocation6], 64, 64, 4
        $region24: #{tpu_custom_call.1} parent=11 // pred_fallthru
          _
        // Predicated region
        $region25: #{tpu_custom_call.1} parent=11 // pred_check
          %p244 = pneg %p144
        $region26: #{tpu_custom_call.1} parent=11 // pred_check_branch
          %246 = sbr.rel (%p244) target = $region28
        $region27: #{tpu_custom_call.1} parent=11 // pred_region
          _
        $region28: #{tpu_custom_call.1} parent=11 // pred_fallthru
          _
        // Predicated region
        $region29: #{tpu_custom_call.1} parent=11 // pred_check
          %p247 = pneg %p170
        $region30: #{tpu_custom_call.1} parent=11 // pred_check_branch
          %249 = sbr.rel (%p247) target = $region32
        $region31: #{tpu_custom_call.1} parent=11 // pred_region
          %251 = vsyncadd [#allocation9], 0
          %s252 = smul.addr %s30, 8
          %s253 = scalar_lea.hbm %s5, %s252
          %s255 = sshll.u32 %s253, 4
          %s256 = int_to_ptr.hbm [resolvable:$true] %s255
          %s257 = sshll.u32 [#allocation8], 4
          %s258 = int_to_ptr.vmem [resolvable:$true] %s257
          %260 = dma.hbm_to_vmem [thread:$0]  %s256, 128, %s258, [#allocation9]
        $region32: #{tpu_custom_call.1} parent=11 // pred_fallthru
          _
      $region12: #{tpu_custom_call.1} parent=5 // pred_fallthru
        _
      %p261 = scmp.lt.s32.totalorder %s20, 2
      // Predicated region
      $region33: #{tpu_custom_call.1} parent=5 // pred_check
        %p262 = pneg %p261
      $region34: #{tpu_custom_call.1} parent=5 // pred_check_branch
        %264 = sbr.rel (%p262) target = $region36
      $region35: #{tpu_custom_call.1} parent=5 // pred_region
        // Predicated region
        $region37: #{tpu_custom_call.1} parent=35 // pred_check
          %p265 = pneg %p54
        $region38: #{tpu_custom_call.1} parent=35 // pred_check_branch
          %267 = sbr.rel (%p265) target = $region40
        $region39: #{tpu_custom_call.1} parent=35 // pred_region
          %s268 = sand.u32 %s44, 1
          %s269 = scalar_lea.sflag [#allocation3], %s268
          %s270 = sand.u32 %s44, 1
          %s271 = smul.addr %s270, 8
          %s272 = scalar_lea.vmem [#allocation2], %s271
          %274 = vsyncadd %s269, 0
          %s275 = sadd.s32 %s28, %s27
          %s276 = smul.addr %s275, 8
          %s277 = scalar_lea.hbm %s0, %s276
          %s279 = sshll.u32 %s277, 4
          %s280 = int_to_ptr.hbm [resolvable:$true] %s279
          %s281 = sshll.u32 %s272, 4
          %s282 = int_to_ptr.vmem [resolvable:$true] %s281
          %284 = dma.hbm_to_vmem [thread:$0]  %s280, 128, %s282, %s269
        $region40: #{tpu_custom_call.1} parent=35 // pred_fallthru
          _
      $region36: #{tpu_custom_call.1} parent=5 // pred_fallthru
        _
      %p285 = scmp.le.s32.totalorder 1, %s20
      %p286 = scmp.lt.s32.totalorder %s20, 3
      %p287 = pnand %p285, %p286
      %p288 = pneg %p287
      // Predicated region
      $region41: #{tpu_custom_call.1} parent=5 // pred_check
        _
      $region42: #{tpu_custom_call.1} parent=5 // pred_check_branch
        %290 = sbr.rel (%p287) target = $region44
      $region43: #{tpu_custom_call.1} parent=5 // pred_region
        %s291 = ssub.s32 %s20, 1
        %s292 = sand.u32 %s47, 1
        %s293 = scalar_lea.sflag [#allocation3], %s292
        %s294 = sand.u32 %s47, 1
        %s295 = smul.addr %s294, 8
        %s296 = scalar_lea.vmem [#allocation2], %s295
        // Predicated region
        $region45: #{tpu_custom_call.1} parent=43 // pred_check
          %p297 = pneg %p60
        $region46: #{tpu_custom_call.1} parent=43 // pred_check_branch
          %299 = sbr.rel (%p297) target = $region48
        $region47: #{tpu_custom_call.1} parent=43 // pred_region
          %301 = dma.done %s293, 128
        $region48: #{tpu_custom_call.1} parent=43 // pred_fallthru
          _
        // Predicated region
        $region49: #{tpu_custom_call.1} parent=43 // pred_check
          %p302 = pneg %p81
        $region50: #{tpu_custom_call.1} parent=43 // pred_check_branch
          %304 = sbr.rel (%p302) target = $region52
        $region51: #{tpu_custom_call.1} parent=43 // pred_region
          %306 = dma.done [#allocation6], 128
        $region52: #{tpu_custom_call.1} parent=43 // pred_fallthru
          _
        // Predicated region
        $region53: #{tpu_custom_call.1} parent=43 // pred_check
          %p307 = pneg %p123
        $region54: #{tpu_custom_call.1} parent=43 // pred_check_branch
          %309 = sbr.rel (%p307) target = $region56
        $region55: #{tpu_custom_call.1} parent=43 // pred_region
          %311 = dma.done [#allocation6], 256
        $region56: #{tpu_custom_call.1} parent=43 // pred_fallthru
          _
        // Predicated region
        $region57: #{tpu_custom_call.1} parent=43 // pred_check
          %p312 = pneg %p170
        $region58: #{tpu_custom_call.1} parent=43 // pred_check_branch
          %314 = sbr.rel (%p312) target = $region60
        $region59: #{tpu_custom_call.1} parent=43 // pred_region
          %316 = dma.done [#allocation9], 128
        $region60: #{tpu_custom_call.1} parent=43 // pred_fallthru
          _
        %s317 = sand.u32 %s47, 1
        %s318 = scalar_lea.sflag [#allocation3], %s317
        %s319 = sand.u32 %s47, 1
        %s320 = smul.addr %s319, 8
        %s321 = scalar_lea.vmem [#allocation2], %s320
        %p322 = pneg %p60
        %p323 = pneg %p57
        %p324 = pneg %p81
        %p325 = pneg %p78
        %p326 = pneg %p102
        %p327 = pneg %p99
        %p328 = pneg %p123
        %p329 = pneg %p120
        %p330 = pneg %p144
        %p331 = pneg %p141
        %p332 = pneg %p170
        %p333 = pneg %p167
        %p334 = pneg %p198
        %p335 = pneg %p195
        %s336 = sand.u32 %s185, 1
        %s337 = scalar_lea.sflag [#allocation4], %s336
        %s338 = sand.u32 %s185, 1
        %s339 = smul.addr %s338, 4
        %s340 = scalar_lea.vmem [#allocation10], %s339
        %v342 = vld [vmem:[%s296] sm:$0xff]
        %v343 = vpack.c.bf16 %v342, %v342
        %v344 = vld [vmem:[#allocation5] sm:$0xf]
        %v345 = vld [vmem:[#allocation5 + $0x4] sm:$0xf]
        %v346 = vld [vmem:[%s2] sm:$0x1]
        %v348 = vperm.slane %v346, 0
        %v352 = vunpack.c.l.b16 %v344
        %v353 = vunpack.c.l.b16 %v345
        %v354 = vpack.c.b16 %v353, %v352
        %vm356 = vcmask 130048
        %v358 = vsel %vm356, %v343, 0
        %360 = vmatpush.bf16.msra.mxu0 0
        %361 = vmatpush.bf16.msra.mxu0 0
        %362 = vmatpush.bf16.msra.mxu0 0
        %363 = vmatpush.bf16.msra.mxu0 0
        %364 = vmatpush.bf16.msra.mxu0 0
        %365 = vmatpush.bf16.msra.mxu0 0
        %366 = vmatpush.bf16.msra.mxu0 0
        %367 = vmatpush.bf16.msra.mxu0 %v354
        %368 = vmatmul.bf16.gmra.mxu0 %v358
        %v369 = vpop.f32.mrf.mxu0
        %v370 = vadd.f32 %v348, %v369
        %v371 = vpop.f32.mrf.mxu0
        %372 = vdwg.mxu0
        %v373 = vmax.f32 %v370, 0.0
        %v374 = vpack.c.bf16 %v373, %v373
        %v375 = vld [vmem:[#allocation7] sm:$0xf]
        %v376 = vld [vmem:[#allocation7 + $0x4] sm:$0xf]
        %v377 = vld [vmem:[#allocation7 + $0x8] sm:$0xf]
        %v378 = vld [vmem:[#allocation7 + $0xc] sm:$0xf]
        %v379 = vld [vmem:[%s4] sm:$0x1]
        %v381 = vperm.slane %v379, 0
        %v387 = vunpack.c.l.b16 %v375
        %v388 = vunpack.c.l.b16 %v376
        %v389 = vunpack.c.l.b16 %v377
        %v390 = vunpack.c.l.b16 %v378
        %v391 = vpack.c.b16 %v388, %v387
        %v392 = vpack.c.b16 %v390, %v389
        %vm395 = vcmask 261120
        %v397 = vsel %vm395, %v374, 0
        %399 = vmatpush.bf16.msra.mxu0 0
        %400 = vmatpush.bf16.msra.mxu0 0
        %401 = vmatpush.bf16.msra.mxu0 0
        %402 = vmatpush.bf16.msra.mxu0 0
        %403 = vmatpush.bf16.msra.mxu0 0
        %404 = vmatpush.bf16.msra.mxu0 0
        %405 = vmatpush.bf16.msra.mxu0 %v392
        %406 = vmatpush.bf16.msra.mxu0 %v391
        %407 = vmatmul.bf16.gmra.mxu0 %v397
        %v408 = vpop.f32.mrf.mxu0
        %v409 = vadd.f32 %v381, %v408
        %v410 = vpop.f32.mrf.mxu0
        %411 = vdwg.mxu0
        %v412 = vmax.f32 %v409, 0.0
        %v413 = vld [vmem:[#allocation8] sm:$0xff]
        %v414 = vadd.f32 %v412, %v413
        %v415 = vpack.c.bf16 %v414, %v414
        %vm416 = vcmask 257024
        %417 = vst.msk [vmem:[%s340] sm:$0xf] %vm416, %v415
        %s418 = sand.u32 %s185, 1
        %s419 = scalar_lea.sflag [#allocation4], %s418
        %s420 = sand.u32 %s185, 1
        %s421 = smul.addr %s420, 4
        %s422 = scalar_lea.vmem [#allocation10], %s421
        // Predicated region
        $region61: #{tpu_custom_call.1} parent=43 // pred_check
          %p423 = pneg %p195
        $region62: #{tpu_custom_call.1} parent=43 // pred_check_branch
          %425 = sbr.rel (%p423) target = $region64
        $region63: #{tpu_custom_call.1} parent=43 // pred_region
          %427 = vsyncadd %s419, 0
          %s428 = sadd.s32 %s30, %s29
          %s429 = smul.addr %s428, 4
          %s430 = scalar_lea.hbm %s6, %s429
          %s432 = sshll.u32 %s422, 4
          %s433 = int_to_ptr.vmem [resolvable:$true] %s432
          %s434 = sshll.u32 %s430, 4
          %s435 = int_to_ptr.hbm [resolvable:$true] %s434
          %437 = dma.vmem_to_hbm [thread:$0]  %s433, 64, %s435, %s419
        $region64: #{tpu_custom_call.1} parent=43 // pred_fallthru
          _
      $region44: #{tpu_custom_call.1} parent=5 // pred_fallthru
        _
      %p438 = scmp.le.s32.totalorder 2, %s20
      // Predicated region
      $region65: #{tpu_custom_call.1} parent=5 // pred_check
        %p439 = pneg %p438
      $region66: #{tpu_custom_call.1} parent=5 // pred_check_branch
        %441 = sbr.rel (%p439) target = $region68
      $region67: #{tpu_custom_call.1} parent=5 // pred_region
        %s442 = ssub.s32 %s20, 2
        // Predicated region
        $region69: #{tpu_custom_call.1} parent=67 // pred_check
          %p443 = pneg %p201
        $region70: #{tpu_custom_call.1} parent=67 // pred_check_branch
          %445 = sbr.rel (%p443) target = $region72
        $region71: #{tpu_custom_call.1} parent=67 // pred_region
          %s446 = sand.u32 %s186, 1
          %s447 = scalar_lea.sflag [#allocation4], %s446
          %s448 = sand.u32 %s186, 1
          %s449 = smul.addr %s448, 4
          %s450 = scalar_lea.vmem [#allocation10], %s449
          %452 = dma.done %s447, 64
        $region72: #{tpu_custom_call.1} parent=67 // pred_fallthru
          _
      $region68: #{tpu_custom_call.1} parent=5 // pred_fallthru
        _
    $region6: #{tpu_custom_call.1} parent=1 // loop_footer
      %s24 = sadd.s32 1, %s20
    $region7: #{tpu_custom_call.1} parent=1 // loop_footer_branch
      %19 = sbr.rel target = $region3
    $region8: #{tpu_custom_call.1} parent=1 // loop_exit
      _
    %453 = vsyncpa [#allocation3], 1
    %s454 = scalar_lea.sflag [#allocation3], 1
    %455 = vsyncpa %s454, 1
    %456 = vsyncpa [#allocation6], 1
    %457 = vsyncpa [#allocation9], 1
    %458 = vsyncpa [#allocation4], 1
    %s459 = scalar_lea.sflag [#allocation4], 1
    %460 = vsyncpa %s459, 1

</llo_original>
